<compile_context>
chip_gen: v7x
topology: tpu7x:2x2x1
jax: 0.10.0
libtpu: 0.0.40
codegen_flags: <defaults>
</compile_context>

<pallas_src>
import enum
import functools
import numpy as np

import jax
import jax.numpy as jnp
from jax.experimental import pallas as pl
from jax.experimental.pallas import tpu as pltpu


class StdType(enum.Enum):
    FIXED = 0
    CONSTANT = 1
    VARIABLE = 2


def _round_up(v, m):
    return (v + m - 1) // m * m


# ---------------------------------------------------------------------------
# Kernels
# ---------------------------------------------------------------------------

def _gauss_variable_kernel(out_p, x_ref, w_ref, b_ref, o_ref):
    """One fused matmul: x:(TB,D) @ W:(D,2*out_p) -> [mean | logstd].

    Writes a single lane-dense slab [mean | logstd | std] of width 3*out_p.
    """
    y = jnp.dot(x_ref[...], w_ref[...], preferred_element_type=jnp.float32)
    y = y + b_ref[...]                       # f32 bias add
    mean = y[:, :out_p]
    logstd = y[:, out_p:]
    std = jnp.exp(logstd)                    # EUP, f32
    o_ref[...] = jnp.concatenate([mean, logstd, std], axis=-1).astype(o_ref.dtype)


def _mean_only_kernel(x_ref, w_ref, b_ref, o_ref):
    """FIXED / CONSTANT std: only the mean head runs on-chip."""
    y = jnp.dot(x_ref[...], w_ref[...], preferred_element_type=jnp.float32)
    o_ref[...] = (y + b_ref[...]).astype(o_ref.dtype)


# ---------------------------------------------------------------------------
# Distribution container (mirrors the PyTorch class semantics)
# ---------------------------------------------------------------------------

class DistributionGaussianDiag:
    def __init__(self, mean, logstd, std=None):
        self._mean = mean
        self._logstd = logstd
        self._std = jnp.exp(logstd) if std is None else std
        self._dim = mean.shape[-1]

    @property
    def mean(self):
        return self._mean

    @property
    def mode(self):
        return self._mean

    @property
    def logstd(self):
        return self._logstd

    @property
    def stddev(self):
        return self._std

    def entropy(self):
        ent = jnp.sum(self._logstd, axis=-1)
        ent += 0.5 * self._dim * np.log(2.0 * np.pi * np.e)
        return ent

    def log_prob(self, x):
        diff = x - self._mean
        logp = -0.5 * jnp.sum(jnp.square(diff / self._std), axis=-1)
        logp += -0.5 * self._dim * np.log(2.0 * np.pi) - jnp.sum(self._logstd, axis=-1)
        return logp


# ---------------------------------------------------------------------------
# Builder (parameter setup in plain JAX, forward in Pallas)
# ---------------------------------------------------------------------------

class DistributionGaussianDiagBuilder:
    def __init__(self, in_size, out_size, std_type, init_std,
                 init_output_scale=0.01, key=None, tile_b=256,
                 compute_dtype=jnp.float32):
        self._std_type = std_type
        self._in = in_size
        self._out = out_size
        self._out_p = _round_up(out_size, 128)          # lane-dense width
        self._tile_b_max = max(8, _round_up(tile_b, 8))
        self._compute_dtype = compute_dtype

        if key is None:
            key = jax.random.PRNGKey(0)
        k1, k2 = jax.random.split(key)
        logstd0 = float(np.log(init_std))

        # --- reference (unpadded, PyTorch-equivalent) parameters -----------
        # nn.Linear weight ~ U(-scale, scale), stored pre-transposed (in, out).
        self.w_mean = jax.random.uniform(
            k1, (in_size, out_size), jnp.float32,
            minval=-init_output_scale, maxval=init_output_scale)
        self.b_mean = jnp.zeros((out_size,), jnp.float32)

        out_p = self._out_p
        if std_type == StdType.VARIABLE:
            self.w_logstd = jax.random.uniform(
                k2, (in_size, out_size), jnp.float32,
                minval=-init_output_scale, maxval=init_output_scale)
            self.b_logstd = jnp.full((out_size,), logstd0, jnp.float32)
            self.logstd_param = None

            # --- fused, lane-padded kernel parameters -----------------------
            w_cat = jnp.zeros((in_size, 2 * out_p), jnp.float32)
            w_cat = w_cat.at[:, :out_size].set(self.w_mean)
            w_cat = w_cat.at[:, out_p:out_p + out_size].set(self.w_logstd)
            b_cat = jnp.zeros((1, 2 * out_p), jnp.float32)
            b_cat = b_cat.at[0, :out_size].set(self.b_mean)
            b_cat = b_cat.at[0, out_p:out_p + out_size].set(self.b_logstd)
            self._w_kernel = w_cat.astype(compute_dtype)
            self._b_kernel = b_cat                     # bias stays f32
        elif std_type in (StdType.FIXED, StdType.CONSTANT):
            self.w_logstd = None
            self.b_logstd = None
            self.logstd_param = jnp.full((out_size,), logstd0, jnp.float32)
            # batch-invariant rows, computed once (exp happens here, not per-row)
            self._logstd_row = self.logstd_param
            self._std_row = jnp.exp(self.logstd_param)

            w_p = jnp.zeros((in_size, out_p), jnp.float32)
            w_p = w_p.at[:, :out_size].set(self.w_mean)
            b_p = jnp.zeros((1, out_p), jnp.float32)
            b_p = b_p.at[0, :out_size].set(self.b_mean)
            self._w_kernel = w_p.astype(compute_dtype)
            self._b_kernel = b_p
        else:
            raise AssertionError(f"Unsupported StdType: {std_type}")

    def __call__(self, x):
        B, D = x.shape
        assert D == self._in
        out, out_p = self._out, self._out_p

        # Batch tiling: big tiles, pad B up to a tile multiple (no hard assert).
        TB = min(self._tile_b_max, _round_up(B, 8))
        B_pad = _round_up(B, TB)
        xp = x if B_pad == B else jnp.pad(x, ((0, B_pad - B), (0, 0)))
        xp = xp.astype(self._compute_dtype)
        grid = (B_pad // TB,)

        w_cols = self._w_kernel.shape[1]
        x_spec = pl.BlockSpec((TB, D), lambda i: (i, 0))
        w_spec = pl.BlockSpec((D, w_cols), lambda i: (0, 0))
        b_spec = pl.BlockSpec((1, w_cols), lambda i: (0, 0))

        if self._std_type == StdType.VARIABLE:
            n_out_cols = 3 * out_p
            kernel = functools.partial(_gauss_variable_kernel, out_p)
            transcendentals = B_pad * out_p
        else:
            n_out_cols = out_p
            kernel = _mean_only_kernel
            transcendentals = 0

        o_spec = pl.BlockSpec((TB, n_out_cols), lambda i: (i, 0))
        out_shape = jax.ShapeDtypeStruct((B_pad, n_out_cols), jnp.float32)

        bytes_accessed = (
            xp.size * xp.dtype.itemsize
            + self._w_kernel.size * self._w_kernel.dtype.itemsize
            + self._b_kernel.size * self._b_kernel.dtype.itemsize
            + B_pad * n_out_cols * 4)
        cost = pl.CostEstimate(
            flops=2 * B_pad * D * w_cols,
            transcendentals=transcendentals,
            bytes_accessed=bytes_accessed)

        slab = pl.pallas_call(
            kernel,
            out_shape=out_shape,
            grid_spec=pltpu.PrefetchScalarGridSpec(
                num_scalar_prefetch=0,
                grid=grid,
                in_specs=[x_spec, w_spec, b_spec],
                out_specs=o_spec),
            compiler_params=pltpu.CompilerParams(
                dimension_semantics=("parallel",)),
            cost_estimate=cost,
        )(xp, self._w_kernel, self._b_kernel)

        if self._std_type == StdType.VARIABLE:
            mean = slab[:B, :out]
            logstd = slab[:B, out_p:out_p + out]
            std = slab[:B, 2 * out_p:2 * out_p + out]
        else:
            mean = slab[:B, :out]
            logstd = jnp.broadcast_to(self._logstd_row, mean.shape)
            std = jnp.broadcast_to(self._std_row, mean.shape)

        return DistributionGaussianDiag(mean, logstd, std)


# ---------------------------------------------------------------------------
# Reference (pure JAX) for validation
# ---------------------------------------------------------------------------

def _reference(builder, x):
    mean = x @ builder.w_mean + builder.b_mean
    if builder._std_type == StdType.VARIABLE:
        logstd = x @ builder.w_logstd + builder.b_logstd
    else:
        logstd = jnp.broadcast_to(builder.logstd_param, mean.shape)
    return mean, logstd, jnp.exp(logstd)


def _check(builder, x, atol, rtol):
    dist = builder(x)
    jax.block_until_ready(dist.mean)
    jax.block_until_ready(dist.logstd)
    jax.block_until_ready(dist.stddev)
    ref_mean, ref_logstd, ref_std = _reference(builder, x)
    ok = bool(jnp.allclose(dist.mean, ref_mean, atol=atol, rtol=rtol))
    ok &= bool(jnp.allclose(dist.logstd, ref_logstd, atol=atol, rtol=rtol))
    ok &= bool(jnp.allclose(dist.stddev, ref_std, atol=atol, rtol=rtol))
    return ok


if __name__ == "__main__":
    key = jax.random.PRNGKey(0)
    kx, kx2, kp1, kp2, kp3, kp4 = jax.random.split(key, 6)

    B, IN, OUT = 8, 32, 16
    x = jax.random.normal(kx, (B, IN), jnp.float32)
    # also exercise the B-not-multiple-of-tile / padding path
    x_odd = jax.random.normal(kx2, (12, IN), jnp.float32)

    ok = True

    # f32 compute path (exact semantics of the PyTorch module)
    for std_type, kp, xin in ((StdType.VARIABLE, kp1, x),
                              (StdType.CONSTANT, kp2, x),
                              (StdType.FIXED, kp3, x_odd)):
        b = DistributionGaussianDiagBuilder(
            IN, OUT, std_type, init_std=0.5, init_output_scale=0.01, key=kp)
        ok &= _check(b, xin, atol=1e-5, rtol=1e-5)

    # bf16 compute path (halves x / weight DMA bytes; f32 accumulation)
    b_bf16 = DistributionGaussianDiagBuilder(
        IN, OUT, StdType.VARIABLE, init_std=0.5, init_output_scale=0.01,
        key=kp4, compute_dtype=jnp.bfloat16)
    ok &= _check(b_bf16, x, atol=2e-3, rtol=2e-2)

    if ok:
        print("KERNEL_OK")
    else:
        print("KERNEL_MISMATCH")
</pallas_src>

<mosaic_0001>
module attributes {stable_mosaic.version = 11 : i64} {
  func.func @_gauss_variable_kernel(%arg0: i32, %arg1: memref<8x32xf32, #tpu.memory_space<vmem>>, %arg2: memref<32x256xf32, #tpu.memory_space<vmem>>, %arg3: memref<1x256xf32, #tpu.memory_space<vmem>>, %arg4: memref<8x384xf32, #tpu.memory_space<vmem>>) attributes {dimension_semantics = [#tpu.dimension_semantics<parallel>], iteration_bounds = array<i64: 1>, scalar_prefetch = 0 : i64, scratch_operands = 0 : i64, tpu.core_type = #tpu.core_type<tc>, window_params = [{transform_indices = @transform_0, window_bounds = array<i64: 8, 32>}, {pipeline_mode = #tpu.pipeline_mode<synchronous>, transform_indices = @transform_1, window_bounds = array<i64: 32, 256>}, {pipeline_mode = #tpu.pipeline_mode<synchronous>, transform_indices = @transform_2, window_bounds = array<i64: 1, 256>}, {transform_indices = @transform_3, window_bounds = array<i64: 8, 384>}]} {
    %c0 = arith.constant 0 : index
    %c0_0 = arith.constant 0 : index
    %0 = vector.load %arg1[%c0, %c0_0] : memref<8x32xf32, #tpu.memory_space<vmem>>, vector<8x32xf32>
    %c0_1 = arith.constant 0 : index
    %c0_2 = arith.constant 0 : index
    %1 = vector.load %arg2[%c0_1, %c0_2] : memref<32x256xf32, #tpu.memory_space<vmem>>, vector<32x256xf32>
    %cst = arith.constant dense<0.000000e+00> : vector<8x256xf32>
    %2 = tpu.matmul %0, %1, %cst {dimension_numbers = #tpu.dot_dimension_numbers<[1], [0], [0], [1], [0, 0, 1, 1], [], []>} : vector<8x32xf32>, vector<32x256xf32>, vector<8x256xf32> -> vector<8x256xf32>
    %c0_3 = arith.constant 0 : index
    %c0_4 = arith.constant 0 : index
    %3 = vector.load %arg3[%c0_3, %c0_4] : memref<1x256xf32, #tpu.memory_space<vmem>>, vector<1x256xf32>
    %4 = vector.broadcast %3 : vector<1x256xf32> to vector<8x256xf32>
    %5 = arith.addf %2, %4 : vector<8x256xf32>
    %6 = vector.extract_strided_slice %5 {offsets = [0, 0], sizes = [8, 128], strides = [1, 1]} : vector<8x256xf32> to vector<8x128xf32>
    %7 = vector.extract_strided_slice %5 {offsets = [0, 128], sizes = [8, 128], strides = [1, 1]} : vector<8x256xf32> to vector<8x128xf32>
    %8 = math.exp %7 : vector<8x128xf32>
    %9 = tpu.concatenate %6, %7, %8 in 1 : vector<8x128xf32>, vector<8x128xf32>, vector<8x128xf32> -> vector<8x384xf32>
    %c0_5 = arith.constant 0 : index
    %c0_6 = arith.constant 0 : index
    %10 = vector.load %arg4[%c0_5, %c0_6] : memref<8x384xf32, #tpu.memory_space<vmem>>, vector<8x384xf32>
    tpu.vector_store %arg4[%c0_5, %c0_6], %9 {strides = array<i32>} : memref<8x384xf32, #tpu.memory_space<vmem>>, vector<8x384xf32>,
    return
  }
  func.func @transform_0(%arg0: i32) -> (i32, i32) {
    %c0_i32 = arith.constant 0 : i32
    %c0_i32_0 = arith.constant 0 : i32
    return %arg0, %c0_i32 : i32, i32
  }
  func.func @transform_1(%arg0: i32) -> (i32, i32) {
    %c0_i32 = arith.constant 0 : i32
    %c0_i32_0 = arith.constant 0 : i32
    %c0_i32_1 = arith.constant 0 : i32
    return %c0_i32, %c0_i32_0 : i32, i32
  }
  func.func @transform_2(%arg0: i32) -> (i32, i32) {
    %c0_i32 = arith.constant 0 : i32
    %c0_i32_0 = arith.constant 0 : i32
    %c0_i32_1 = arith.constant 0 : i32
    return %c0_i32, %c0_i32_0 : i32, i32
  }
  func.func @transform_3(%arg0: i32) -> (i32, i32) {
    %c0_i32 = arith.constant 0 : i32
    %c0_i32_0 = arith.constant 0 : i32
    return %arg0, %c0_i32 : i32, i32
  }
}

</mosaic_0001>

<llo_original>
// kernel: tpu_custom_call.1
$region0: #{tpu_custom_call.1}
  #allocation0 [shape = 'u32[]', space=smem, size = 0x4, offset = 0x4, fixed_abs, tag = 'smem constant byte address 0x4 - core index']
  #allocation1 [shape = 'u32[144,128]{1,0:T(1,128)}', space=vmem, size = 0x12000, scoped, tag = 'internal scratch']
  %s0 = inlined_call_operand.hbm [shape: f32[8,32], index: 0, kind: input, shape index: {}]
  %s1 = inlined_call_operand.hbm [shape: f32[32,256], index: 1, kind: input, shape index: {}]
  %s2 = inlined_call_operand.vmem [shape: f32[1,256], index: 2, kind: input, shape index: {}]
  %s3 = inlined_call_operand.hbm [shape: f32[8,384], index: 3, kind: output, shape index: {}]
  %s4 = sld [smem:[#allocation0]]
  $region30: #{tpu_custom_call.1} parent=0
    _
  %s6 = ssub.s32 1, %s4
  %s7 = scalar_select 0, %s6, %s4
  $region1: #{tpu_custom_call.1} parent=0
    #allocation2 [shape = 'u8[4096]{0}', space=vmem, size = 0x1000, scoped, tag = 'input window, operand 0, single buffered']
    #allocation3 [shape = 's32[1]{0}', space=sflag, size = 0x4, scoped, tag = 'scoped memory for tpu_custom_call.1']
    #allocation4 [shape = 's32[1]{0}', space=sflag, size = 0x4, scoped, tag = 'scoped memory for tpu_custom_call.1']
    #allocation5 [shape = 'u8[32768]{0}', space=vmem, size = 0x8000, scoped, tag = 'input window, operand 1, single buffered']
    #allocation6 [shape = 's32[1]{0}', space=sflag, size = 0x4, scoped, tag = 'scoped memory for tpu_custom_call.1']
    #allocation7 [shape = 'u8[12288]{0}', space=vmem, size = 0x3000, scoped, tag = 'output window, operand 0, single buffered']
    %8 = vsyncpa [#allocation3], 0
    %9 = vsyncpa [#allocation6], 0
    %10 = vsyncpa [#allocation4], 0
    // Predicated region
    $region2: #{tpu_custom_call.1} parent=1 // pred_check
      _
    $region3: #{tpu_custom_call.1} parent=1 // pred_check_branch
      %12 = sbr.rel (0) target = $region5
    $region4: #{tpu_custom_call.1} parent=1 // pred_region
      %s14 = ssub.s32 128, 128
      %15 = vsyncadd [#allocation3], %s14
      %s17 = sshll.u32 [#allocation2], 4
      %s18 = int_to_ptr.vmem [resolvable:$true] %s17
      %20 = dma.hbm_to_vmem [thread:$0]  %s0, 128, %s18, [#allocation3]
    $region5: #{tpu_custom_call.1} parent=1 // pred_fallthru
      _
    // Predicated region
    $region6: #{tpu_custom_call.1} parent=1 // pred_check
      _
    $region7: #{tpu_custom_call.1} parent=1 // pred_check_branch
      %22 = sbr.rel (0) target = $region9
    $region8: #{tpu_custom_call.1} parent=1 // pred_region
      %s24 = ssub.s32 1024, 1024
      %25 = vsyncadd [#allocation6], %s24
      %s26 = sshll.u32 [#allocation5], 4
      %s27 = int_to_ptr.vmem [resolvable:$true] %s26
      %32 = dma.hbm_to_vmem [thread:$0]  %s1, 1024, %s27, [#allocation6], 256, 256, 16
    $region9: #{tpu_custom_call.1} parent=1 // pred_fallthru
      _
    // Predicated region
    $region10: #{tpu_custom_call.1} parent=1 // pred_check
      _
    $region11: #{tpu_custom_call.1} parent=1 // pred_check_branch
      %34 = sbr.rel (0) target = $region13
    $region12: #{tpu_custom_call.1} parent=1 // pred_region
      _
    $region13: #{tpu_custom_call.1} parent=1 // pred_fallthru
      _
    // Predicated region
    $region14: #{tpu_custom_call.1} parent=1 // pred_check
      _
    $region15: #{tpu_custom_call.1} parent=1 // pred_check_branch
      %36 = sbr.rel (0) target = $region17
    $region16: #{tpu_custom_call.1} parent=1 // pred_region
      %37 = dma.done [#allocation3], 128
    $region17: #{tpu_custom_call.1} parent=1 // pred_fallthru
      _
    // Predicated region
    $region18: #{tpu_custom_call.1} parent=1 // pred_check
      _
    $region19: #{tpu_custom_call.1} parent=1 // pred_check_branch
      %39 = sbr.rel (0) target = $region21
    $region20: #{tpu_custom_call.1} parent=1 // pred_region
      %40 = dma.done [#allocation6], 1024
    $region21: #{tpu_custom_call.1} parent=1 // pred_fallthru
      _
    %v41 = vld [vmem:[#allocation2] sm:$0xff]
    %v42 = vld [vmem:[#allocation5] sm:$0xff]
    %v43 = vld [vmem:[#allocation5 + $0x8] sm:$0xff]
    %v44 = vld [vmem:[#allocation5 + $0x10] sm:$0xff]
    %v45 = vld [vmem:[#allocation5 + $0x18] sm:$0xff]
    %v46 = vld [vmem:[#allocation5 + $0x20] sm:$0xff]
    %v47 = vld [vmem:[#allocation5 + $0x28] sm:$0xff]
    %v48 = vld [vmem:[#allocation5 + $0x30] sm:$0xff]
    %v49 = vld [vmem:[#allocation5 + $0x38] sm:$0xff]
    %v50 = vld [vmem:[%s2] sm:$0x3]
    %v52 = vlaneseq
    %v53 = vshrl.u32 %v52, 7
    %v54 = vsub.s32 0, %v53
    %v55 = vrot.slane %v50, %v54
    %v56 = vlaneseq
    %v57 = vshrl.u32 %v56, 7
    %v58 = vsub.s32 1, %v57
    %v59 = vrot.slane %v50, %v58
    %vm62 = vcmask 261120
    %v64 = vsel %vm62, %v41, 0
    %66 = vmatprep.subr.mxu0 %v43
    %67 = vmatpush1.msra.mxu0 %v42
    %68 = vmatprep.subr.mxu0 %v45
    %69 = vmatpush1.msra.mxu0 %v44
    %70 = vmatprep.subr.mxu0 %v47
    %71 = vmatpush1.msra.mxu0 %v46
    %72 = vmatprep.subr.mxu0 %v49
    %73 = vmatpush1.msra.mxu0 %v48
    %74 = vmatprep.subr.mxu0 0.0
    %75 = vmatpush1.msra.mxu0 0.0
    %76 = vmatprep.subr.mxu0 0.0
    %77 = vmatpush1.msra.mxu0 0.0
    %78 = vmatprep.subr.mxu0 0.0
    %79 = vmatpush1.msra.mxu0 0.0
    %80 = vmatprep.subr.mxu0 0.0
    %81 = vmatpush1.msra.mxu0 0.0
    %82 = vmatprep.subr.mxu0 0.0
    %83 = vmatpush1.msra.mxu0 0.0
    %84 = vmatprep.subr.mxu0 0.0
    %85 = vmatpush1.msra.mxu0 0.0
    %86 = vmatprep.subr.mxu0 0.0
    %87 = vmatpush1.msra.mxu0 0.0
    %88 = vmatprep.subr.mxu0 0.0
    %89 = vmatpush1.msra.mxu0 0.0
    %90 = vmatprep.subr.mxu0 0.0
    %91 = vmatpush1.msra.mxu0 0.0
    %92 = vmatprep.subr.mxu0 0.0
    %93 = vmatpush1.msra.mxu0 0.0
    %94 = vmatprep.subr.mxu0 0.0
    %95 = vmatpush1.msra.mxu0 0.0
    %96 = vmatprep.subr.mxu0 0.0
    %97 = vmatpush1.msra.mxu0 0.0
    %98 = vmatprep.subr.mxu0 0.0
    %99 = vmatpush1.msra.mxu0 0.0
    %100 = vmatprep.subr.mxu0 0.0
    %101 = vmatpush1.msra.mxu0 0.0
    %102 = vmatprep.subr.mxu0 0.0
    %103 = vmatpush1.msra.mxu0 0.0
    %104 = vmatprep.subr.mxu0 0.0
    %105 = vmatpush1.msra.mxu0 0.0
    %106 = vmatprep.subr.mxu0 0.0
    %107 = vmatpush1.msra.mxu0 0.0
    %108 = vmatprep.subr.mxu0 0.0
    %109 = vmatpush1.msra.mxu0 0.0
    %110 = vmatprep.subr.mxu0 0.0
    %111 = vmatpush1.msra.mxu0 0.0
    %112 = vmatprep.subr.mxu0 0.0
    %113 = vmatpush1.msra.mxu0 0.0
    %114 = vmatprep.subr.mxu0 0.0
    %115 = vmatpush1.msra.mxu0 0.0
    %116 = vmatprep.subr.mxu0 0.0
    %117 = vmatpush1.msra.mxu0 0.0
    %118 = vmatprep.subr.mxu0 0.0
    %119 = vmatpush1.msra.mxu0 0.0
    %120 = vmatprep.subr.mxu0 0.0
    %121 = vmatpush1.msra.mxu0 0.0
    %122 = vmatprep.subr.mxu0 0.0
    %123 = vmatpush1.msra.mxu0 0.0
    %124 = vmatprep.subr.mxu0 0.0
    %125 = vmatpush1.msra.mxu0 0.0
    %126 = vmatprep.subr.mxu0 0.0
    %127 = vmatpush1.msra.mxu0 0.0
    %128 = vmatprep.subr.mxu0 0.0
    %129 = vmatpush1.msra.mxu0 0.0
    %130 = vmatprep.mubr.f32.mxu0 0.0
    %131 = vmatmul.mubr.f32.gmra.mrb[0].mxu0 %v64
    %v132 = vpop.f32.mrb[0].mxu0
    %v133 = vadd.f32 %v55, %v132
    %v134 = vpop.f32.mrb[0].mxu0
    %v135 = vadd.f32 %v59, %v134
    %136 = vdwg.mxu0
    %v137 = vmul.f32 %v135, 1.442695
    %v138 = vpow.pop %v137
    %139 = vst [vmem:[#allocation7] sm:$0xff] %v133
    %140 = vst [vmem:[#allocation7 + $0x8] sm:$0xff] %v135
    %141 = vst [vmem:[#allocation7 + $0x10] sm:$0xff] %v138
    // Predicated region
    $region22: #{tpu_custom_call.1} parent=1 // pred_check
      _
    $region23: #{tpu_custom_call.1} parent=1 // pred_check_branch
      %143 = sbr.rel (0) target = $region25
    $region24: #{tpu_custom_call.1} parent=1 // pred_region
      %s145 = ssub.s32 384, 384
      %146 = vsyncadd [#allocation4], %s145
      %s148 = sshll.u32 [#allocation7], 4
      %s149 = int_to_ptr.vmem [resolvable:$true] %s148
      %151 = dma.vmem_to_hbm [thread:$0]  %s149, 384, %s3, [#allocation4]
    $region25: #{tpu_custom_call.1} parent=1 // pred_fallthru
      _
    // Predicated region
    $region26: #{tpu_custom_call.1} parent=1 // pred_check
      _
    $region27: #{tpu_custom_call.1} parent=1 // pred_check_branch
      %153 = sbr.rel (0) target = $region29
    $region28: #{tpu_custom_call.1} parent=1 // pred_region
      %154 = dma.done [#allocation4], 384
    $region29: #{tpu_custom_call.1} parent=1 // pred_fallthru
      _
    %155 = vsyncpa [#allocation3], 1
    %156 = vsyncpa [#allocation6], 1
    %157 = vsyncpa [#allocation4], 1

</llo_original>
